<compile_context>
chip_gen: v5e
topology: v5e:2x2
jax: 0.10.0
libtpu: 0.0.40
codegen_flags: <defaults>
</compile_context>

<pallas_src>
import functools
import math

import jax
import jax.numpy as jnp
from jax.experimental import pallas as pl
from jax.experimental.pallas import tpu as pltpu


def _refined_recip(x):
    # EUP vrcp (~2^-12 rel error) + one Newton step -> ~1e-7 rel error.
    r = pl.reciprocal(x, approx=True)
    return r * (2.0 - x * r)


def _cluster_assign_kernel(batch_ref, centers_t_ref, c_sq_ref, out_ref, *,
                           inv_alpha: float, power: float):
    # batch_ref:     [TILE_B, D]  native dtype, streamed per grid step
    # centers_t_ref: [D, K]       resident (constant index_map), batch dtype
    # c_sq_ref:      [1, K]       resident, f32 (precomputed ||c||^2)
    # out_ref:       [TILE_B, K]
    x = batch_ref[...]
    xf = x.astype(jnp.float32)
    x_sq = jnp.sum(xf * xf, axis=1, keepdims=True)        # [TILE_B, 1] f32 (VPU)
    c_sq = c_sq_ref[...]                                   # [1, K] f32

    # Cross term on the MXU; centers pre-transposed in the wrapper -> plain
    # row-major matmul, no in-kernel XLU transpose.
    cross = jnp.dot(x, centers_t_ref[...],
                    preferred_element_type=jnp.float32)    # [TILE_B, K] f32

    # ||x - c||^2 = ||x||^2 + ||c||^2 - 2 x.c, floored at 0 (fp cancellation).
    norm_sq = jnp.maximum(x_sq + c_sq - 2.0 * cross, 0.0)

    # Student-t numerator: 1 / (1 + ||x-c||^2 / alpha).
    numerator = _refined_recip(1.0 + norm_sq * inv_alpha)

    # power = (alpha + 1) / 2 ; strip dead EUP work for the common cases.
    if power == 1.0:
        pass
    elif power == 0.5:
        numerator = jnp.sqrt(numerator)
    else:
        numerator = numerator ** power

    denom = jnp.sum(numerator, axis=1, keepdims=True)      # [TILE_B, 1]
    out_ref[...] = (numerator * _refined_recip(denom)).astype(out_ref.dtype)


def _choose_tile_b(batch_size: int, bytes_per_row: int) -> int:
    """Batch tile big enough that per-step DMA dwarfs the ~0.35us grid-step
    overhead, bounded for VMEM, multiple of 8; grid rounded to even length
    when tiling so both v7x TensorCores get work."""
    target_bytes = 4 << 20
    tile = target_bytes // max(bytes_per_row, 1)
    tile = int(max(512, min(8192, tile))) // 8 * 8
    if batch_size <= tile:
        return batch_size
    n = pl.cdiv(batch_size, tile)
    if n > 1 and n % 2 == 1:
        n += 1
    return ((pl.cdiv(batch_size, n) + 7) // 8) * 8


def cluster_assignment(batch: jax.Array, cluster_centers: jax.Array, alpha: float = 1.0):
    """Pallas TPU implementation of ClusterAssignment.forward.

    batch:            [B, D] float
    cluster_centers:  [K, D] float
    returns: (soft_assignment [B, K], cluster_centers [K, D])
    """
    B, D = batch.shape
    K, D2 = cluster_centers.shape
    assert D == D2, "embedding dimension mismatch"

    out_dtype = batch.dtype if jnp.issubdtype(batch.dtype, jnp.floating) else jnp.float32

    # Centers are persistent params in DEC: this prep (transpose + ||c||^2) is a
    # tiny one-time cost that constant-folds under jit / could be hoisted out.
    centers_f32 = cluster_centers.astype(jnp.float32)
    c_sq = jnp.sum(centers_f32 * centers_f32, axis=1, keepdims=True).T    # [1, K] f32
    centers_t = centers_f32.T.astype(batch.dtype)                          # [D, K]

    in_bytes = jnp.dtype(batch.dtype).itemsize
    out_bytes = jnp.dtype(out_dtype).itemsize
    TILE_B = _choose_tile_b(B, D * in_bytes + K * out_bytes)
    grid = (pl.cdiv(B, TILE_B),)

    power = float(alpha + 1.0) / 2.0
    kernel = functools.partial(_cluster_assign_kernel,
                               inv_alpha=1.0 / float(alpha), power=power)

    # Clamp the scoped-VMEM request to this generation's physical VMEM
    # (v7x: 64 MiB per TC) minus headroom.
    try:
        phys_vmem = int(pltpu.get_tpu_info().vmem_capacity_bytes)
    except Exception:
        phys_vmem = 64 << 20
    vmem_cap = max(phys_vmem - (8 << 20), 16 << 20)

    def run(single_buffer_resident: bool):
        resident_kw = {"pipeline_mode": pl.Buffered(1)} if single_buffer_resident else {}
        n_res = 1 if single_buffer_resident else 2
        est = (2 * TILE_B * D * in_bytes          # streamed batch tile (double-buffered)
               + 2 * TILE_B * K * out_bytes       # output tile (double-buffered)
               + n_res * (D * K * in_bytes + K * 4))
        vmem_limit = int(min(max(2 * est + (4 << 20), 32 << 20), vmem_cap))
        return pl.pallas_call(
            kernel,
            out_shape=jax.ShapeDtypeStruct((B, K), out_dtype),
            grid_spec=pltpu.PrefetchScalarGridSpec(
                num_scalar_prefetch=0,
                grid=grid,
                in_specs=[
                    pl.BlockSpec((TILE_B, D), lambda i: (i, 0)),               # batch (streamed)
                    pl.BlockSpec((D, K), lambda i: (0, 0), **resident_kw),     # centers^T (resident)
                    pl.BlockSpec((1, K), lambda i: (0, 0), **resident_kw),     # ||c||^2 (resident)
                ],
                out_specs=pl.BlockSpec((TILE_B, K), lambda i: (i, 0)),
            ),
            compiler_params=pltpu.CompilerParams(
                dimension_semantics=("parallel",),    # rows independent -> megacore sharding
                vmem_limit_bytes=vmem_limit),
        )(batch, centers_t, c_sq)

    try:
        soft = jax.block_until_ready(run(True))
    except Exception:
        # pipeline_mode / Buffered(1) not supported on this jax version:
        # fall back to default double-buffered resident operands.
        soft = run(False)

    return soft, cluster_centers


def xavier_uniform(key, shape):
    # Matches torch.nn.init.xavier_uniform_ for a 2-D tensor [fan_out, fan_in].
    fan_out, fan_in = shape
    bound = math.sqrt(6.0 / (fan_in + fan_out))
    return jax.random.uniform(key, shape, minval=-bound, maxval=bound, dtype=jnp.float32)


if __name__ == "__main__":
    key = jax.random.PRNGKey(0)
    k_centers, k_batch = jax.random.split(key)

    cluster_number = 4
    embedding_dimension = 32
    batch_size = 8
    alpha = 1.0

    cluster_centers = xavier_uniform(k_centers, (cluster_number, embedding_dimension))
    batch = jax.random.normal(k_batch, (batch_size, embedding_dimension), dtype=jnp.float32)

    soft_assign, centers_out = cluster_assignment(batch, cluster_centers, alpha=alpha)
    soft_assign = jax.block_until_ready(soft_assign)

    # Pure-JAX reference (same math as the PyTorch module).
    ns_ref = jnp.sum((batch[:, None, :] - cluster_centers[None, :, :]) ** 2, axis=2)
    num_ref = (1.0 / (1.0 + ns_ref / alpha)) ** ((alpha + 1.0) / 2.0)
    ref = num_ref / jnp.sum(num_ref, axis=1, keepdims=True)

    assert soft_assign.shape == (batch_size, cluster_number)
    assert jnp.allclose(soft_assign, ref, atol=1e-5, rtol=1e-4), "mismatch vs reference"
    assert jnp.allclose(centers_out, cluster_centers), "centers passthrough mismatch"

    print("KERNEL_OK")
</pallas_src>

<mosaic_0001>
module attributes {stable_mosaic.version = 11 : i64} {
  func.func @_cluster_assign_kernel(%arg0: i32, %arg1: memref<8x32xf32, #tpu.memory_space<vmem>>, %arg2: memref<32x4xf32, #tpu.memory_space<vmem>>, %arg3: memref<1x4xf32, #tpu.memory_space<vmem>>, %arg4: memref<8x4xf32, #tpu.memory_space<vmem>>) attributes {dimension_semantics = [#tpu.dimension_semantics<parallel>], iteration_bounds = array<i64: 1>, scalar_prefetch = 0 : i64, scratch_operands = 0 : i64, tpu.core_type = #tpu.core_type<tc>, window_params = [{transform_indices = @transform_0, window_bounds = array<i64: 8, 32>}, {pipeline_mode = #tpu.pipeline_mode<synchronous>, transform_indices = @transform_1, window_bounds = array<i64: 32, 4>}, {pipeline_mode = #tpu.pipeline_mode<synchronous>, transform_indices = @transform_2, window_bounds = array<i64: 1, 4>}, {transform_indices = @transform_3, window_bounds = array<i64: 8, 4>}]} {
    %c0 = arith.constant 0 : index
    %c0_0 = arith.constant 0 : index
    %0 = vector.load %arg1[%c0, %c0_0] : memref<8x32xf32, #tpu.memory_space<vmem>>, vector<8x32xf32>
    %1 = arith.mulf %0, %0 : vector<8x32xf32>
    %cst = arith.constant dense<0.000000e+00> : vector<8xf32>
    %2 = vector.multi_reduction <add>, %1, %cst [1] : vector<8x32xf32> to vector<8xf32>
    %3 = vector.shape_cast %2 : vector<8xf32> to vector<8x1xf32>
    %c0_1 = arith.constant 0 : index
    %c0_2 = arith.constant 0 : index
    %4 = vector.load %arg3[%c0_1, %c0_2] : memref<1x4xf32, #tpu.memory_space<vmem>>, vector<1x4xf32>
    %c0_3 = arith.constant 0 : index
    %c0_4 = arith.constant 0 : index
    %5 = vector.load %arg2[%c0_3, %c0_4] : memref<32x4xf32, #tpu.memory_space<vmem>>, vector<32x4xf32>
    %cst_5 = arith.constant dense<0.000000e+00> : vector<8x4xf32>
    %6 = tpu.matmul %0, %5, %cst_5 {dimension_numbers = #tpu.dot_dimension_numbers<[1], [0], [0], [1], [0, 0, 1, 1], [], []>} : vector<8x32xf32>, vector<32x4xf32>, vector<8x4xf32> -> vector<8x4xf32>
    %7 = vector.broadcast %3 : vector<8x1xf32> to vector<8x4xf32>
    %8 = vector.broadcast %4 : vector<1x4xf32> to vector<8x4xf32>
    %9 = arith.addf %7, %8 : vector<8x4xf32>
    %cst_6 = arith.constant 2.000000e+00 : f32
    %10 = vector.broadcast %cst_6 : f32 to vector<8x4xf32>
    %11 = arith.mulf %10, %6 : vector<8x4xf32>
    %12 = arith.subf %9, %11 : vector<8x4xf32>
    %cst_7 = arith.constant 0.000000e+00 : f32
    %13 = vector.broadcast %cst_7 : f32 to vector<8x4xf32>
    %14 = arith.maximumf %12, %13 : vector<8x4xf32>
    %cst_8 = arith.constant 1.000000e+00 : f32
    %15 = vector.broadcast %cst_8 : f32 to vector<8x4xf32>
    %16 = arith.mulf %14, %15 : vector<8x4xf32>
    %cst_9 = arith.constant 1.000000e+00 : f32
    %17 = vector.broadcast %cst_9 : f32 to vector<8x4xf32>
    %18 = arith.addf %17, %16 : vector<8x4xf32>
    %19 = tpu.reciprocal %18 {approx = true} : vector<8x4xf32> -> vector<8x4xf32>
    %20 = arith.mulf %18, %19 : vector<8x4xf32>
    %cst_10 = arith.constant 2.000000e+00 : f32
    %21 = vector.broadcast %cst_10 : f32 to vector<8x4xf32>
    %22 = arith.subf %21, %20 : vector<8x4xf32>
    %23 = arith.mulf %19, %22 : vector<8x4xf32>
    %cst_11 = arith.constant dense<0.000000e+00> : vector<8xf32>
    %24 = vector.multi_reduction <add>, %23, %cst_11 [1] : vector<8x4xf32> to vector<8xf32>
    %25 = vector.shape_cast %24 : vector<8xf32> to vector<8x1xf32>
    %26 = tpu.reciprocal %25 {approx = true} : vector<8x1xf32> -> vector<8x1xf32>
    %27 = arith.mulf %25, %26 : vector<8x1xf32>
    %cst_12 = arith.constant 2.000000e+00 : f32
    %28 = vector.broadcast %cst_12 : f32 to vector<8x1xf32>
    %29 = arith.subf %28, %27 : vector<8x1xf32>
    %30 = arith.mulf %26, %29 : vector<8x1xf32>
    %31 = vector.broadcast %30 : vector<8x1xf32> to vector<8x4xf32>
    %32 = arith.mulf %23, %31 : vector<8x4xf32>
    %c0_13 = arith.constant 0 : index
    %c0_14 = arith.constant 0 : index
    %33 = vector.load %arg4[%c0_13, %c0_14] : memref<8x4xf32, #tpu.memory_space<vmem>>, vector<8x4xf32>
    tpu.vector_store %arg4[%c0_13, %c0_14], %32 {strides = array<i32>} : memref<8x4xf32, #tpu.memory_space<vmem>>, vector<8x4xf32>,
    return
  }
  func.func @transform_0(%arg0: i32) -> (i32, i32) {
    %c0_i32 = arith.constant 0 : i32
    %c0_i32_0 = arith.constant 0 : i32
    return %arg0, %c0_i32 : i32, i32
  }
  func.func @transform_1(%arg0: i32) -> (i32, i32) {
    %c0_i32 = arith.constant 0 : i32
    %c0_i32_0 = arith.constant 0 : i32
    %c0_i32_1 = arith.constant 0 : i32
    return %c0_i32, %c0_i32_0 : i32, i32
  }
  func.func @transform_2(%arg0: i32) -> (i32, i32) {
    %c0_i32 = arith.constant 0 : i32
    %c0_i32_0 = arith.constant 0 : i32
    %c0_i32_1 = arith.constant 0 : i32
    return %c0_i32, %c0_i32_0 : i32, i32
  }
  func.func @transform_3(%arg0: i32) -> (i32, i32) {
    %c0_i32 = arith.constant 0 : i32
    %c0_i32_0 = arith.constant 0 : i32
    return %arg0, %c0_i32 : i32, i32
  }
}

module attributes {stable_mosaic.version = 11 : i64} {
  func.func @_cluster_assign_kernel(%arg0: i32, %arg1: memref<8x32xf32, #tpu.memory_space<vmem>>, %arg2: memref<32x4xf32, #tpu.memory_space<vmem>>, %arg3: memref<1x4xf32, #tpu.memory_space<vmem>>, %arg4: memref<8x4xf32, #tpu.memory_space<vmem>>) attributes {dimension_semantics = [#tpu.dimension_semantics<parallel>], iteration_bounds = array<i64: 1>, scalar_prefetch = 0 : i64, scratch_operands = 0 : i64, tpu.core_type = #tpu.core_type<tc>, window_params = [{transform_indices = @transform_0, window_bounds = array<i64: 8, 32>}, {pipeline_mode = #tpu.pipeline_mode<synchronous>, transform_indices = @transform_1, window_bounds = array<i64: 32, 4>}, {pipeline_mode = #tpu.pipeline_mode<synchronous>, transform_indices = @transform_2, window_bounds = array<i64: 1, 4>}, {transform_indices = @transform_3, window_bounds = array<i64: 8, 4>}]} {
    %c0 = arith.constant 0 : index
    %c0_0 = arith.constant 0 : index
    %0 = vector.load %arg1[%c0, %c0_0] : memref<8x32xf32, #tpu.memory_space<vmem>>, vector<8x32xf32>
    %1 = arith.mulf %0, %0 : vector<8x32xf32>
    %cst = arith.constant dense<0.000000e+00> : vector<8xf32>
    %2 = vector.multi_reduction <add>, %1, %cst [1] : vector<8x32xf32> to vector<8xf32>
    %3 = vector.shape_cast %2 : vector<8xf32> to vector<8x1xf32>
    %c0_1 = arith.constant 0 : index
    %c0_2 = arith.constant 0 : index
    %4 = vector.load %arg3[%c0_1, %c0_2] : memref<1x4xf32, #tpu.memory_space<vmem>>, vector<1x4xf32>
    %c0_3 = arith.constant 0 : index
    %c0_4 = arith.constant 0 : index
    %5 = vector.load %arg2[%c0_3, %c0_4] : memref<32x4xf32, #tpu.memory_space<vmem>>, vector<32x4xf32>
    %cst_5 = arith.constant dense<0.000000e+00> : vector<8x4xf32>
    %6 = tpu.matmul %0, %5, %cst_5 {dimension_numbers = #tpu.dot_dimension_numbers<[1], [0], [0], [1], [0, 0, 1, 1], [], []>} : vector<8x32xf32>, vector<32x4xf32>, vector<8x4xf32> -> vector<8x4xf32>
    %7 = vector.broadcast %3 : vector<8x1xf32> to vector<8x4xf32>
    %8 = vector.broadcast %4 : vector<1x4xf32> to vector<8x4xf32>
    %9 = arith.addf %7, %8 : vector<8x4xf32>
    %cst_6 = arith.constant 2.000000e+00 : f32
    %10 = vector.broadcast %cst_6 : f32 to vector<8x4xf32>
    %11 = arith.mulf %10, %6 : vector<8x4xf32>
    %12 = arith.subf %9, %11 : vector<8x4xf32>
    %cst_7 = arith.constant 0.000000e+00 : f32
    %13 = vector.broadcast %cst_7 : f32 to vector<8x4xf32>
    %14 = arith.maximumf %12, %13 : vector<8x4xf32>
    %cst_8 = arith.constant 1.000000e+00 : f32
    %15 = vector.broadcast %cst_8 : f32 to vector<8x4xf32>
    %16 = arith.mulf %14, %15 : vector<8x4xf32>
    %cst_9 = arith.constant 1.000000e+00 : f32
    %17 = vector.broadcast %cst_9 : f32 to vector<8x4xf32>
    %18 = arith.addf %17, %16 : vector<8x4xf32>
    %19 = tpu.reciprocal %18 {approx = true} : vector<8x4xf32> -> vector<8x4xf32>
    %20 = arith.mulf %18, %19 : vector<8x4xf32>
    %cst_10 = arith.constant 2.000000e+00 : f32
    %21 = vector.broadcast %cst_10 : f32 to vector<8x4xf32>
    %22 = arith.subf %21, %20 : vector<8x4xf32>
    %23 = arith.mulf %19, %22 : vector<8x4xf32>
    %cst_11 = arith.constant dense<0.000000e+00> : vector<8xf32>
    %24 = vector.multi_reduction <add>, %23, %cst_11 [1] : vector<8x4xf32> to vector<8xf32>
    %25 = vector.shape_cast %24 : vector<8xf32> to vector<8x1xf32>
    %26 = tpu.reciprocal %25 {approx = true} : vector<8x1xf32> -> vector<8x1xf32>
    %27 = arith.mulf %25, %26 : vector<8x1xf32>
    %cst_12 = arith.constant 2.000000e+00 : f32
    %28 = vector.broadcast %cst_12 : f32 to vector<8x1xf32>
    %29 = arith.subf %28, %27 : vector<8x1xf32>
    %30 = arith.mulf %26, %29 : vector<8x1xf32>
    %31 = vector.broadcast %30 : vector<8x1xf32> to vector<8x4xf32>
    %32 = arith.mulf %23, %31 : vector<8x4xf32>
    %c0_13 = arith.constant 0 : index
    %c0_14 = arith.constant 0 : index
    %33 = vector.load %arg4[%c0_13, %c0_14] : memref<8x4xf32, #tpu.memory_space<vmem>>, vector<8x4xf32>
    tpu.vector_store %arg4[%c0_13, %c0_14], %32 {strides = array<i32>} : memref<8x4xf32, #tpu.memory_space<vmem>>, vector<8x4xf32>,
    return
  }
  func.func @transform_0(%arg0: i32) -> (i32, i32) {
    %c0_i32 = arith.constant 0 : i32
    %c0_i32_0 = arith.constant 0 : i32
    return %arg0, %c0_i32 : i32, i32
  }
  func.func @transform_1(%arg0: i32) -> (i32, i32) {
    %c0_i32 = arith.constant 0 : i32
    %c0_i32_0 = arith.constant 0 : i32
    %c0_i32_1 = arith.constant 0 : i32
    return %c0_i32, %c0_i32_0 : i32, i32
  }
  func.func @transform_2(%arg0: i32) -> (i32, i32) {
    %c0_i32 = arith.constant 0 : i32
    %c0_i32_0 = arith.constant 0 : i32
    %c0_i32_1 = arith.constant 0 : i32
    return %c0_i32, %c0_i32_0 : i32, i32
  }
  func.func @transform_3(%arg0: i32) -> (i32, i32) {
    %c0_i32 = arith.constant 0 : i32
    %c0_i32_0 = arith.constant 0 : i32
    return %arg0, %c0_i32 : i32, i32
  }
}

</mosaic_0001>

<llo_original>
// kernel: tpu_custom_call.1
$region0: #{tpu_custom_call.1}
  #allocation0 [shape = 'u32[]', space=smem, size = 0x4, offset = 0x4, fixed_abs, tag = 'smem constant byte address 0x4 - core index']
  #allocation1 [shape = 'u32[72,128]{1,0:T(1,128)}', space=vmem, size = 0x9000, scoped, tag = 'internal scratch']
  %s0 = inlined_call_operand.vmem [shape: f32[8,32], index: 0, kind: input, shape index: {}]
  %s1 = inlined_call_operand.vmem [shape: f32[32,4], index: 1, kind: input, shape index: {}]
  %s2 = inlined_call_operand.vmem [shape: f32[1,4], index: 2, kind: input, shape index: {}]
  %s3 = inlined_call_operand.vmem [shape: f32[8,4], index: 3, kind: output, shape index: {}]
  %s4 = sld [smem:[#allocation0]]
  $region22: #{tpu_custom_call.1} parent=0
    _
  %s6 = ssub.s32 1, %s4
  %s7 = scalar_select 0, %s6, %s4
  // Predicated region
  $region2: #{tpu_custom_call.1} parent=0 // pred_check
    _
  $region3: #{tpu_custom_call.1} parent=0 // pred_check_branch
    %9 = sbr.rel (0) target = $region5
  $region4: #{tpu_custom_call.1} parent=0 // pred_region
    _
  $region5: #{tpu_custom_call.1} parent=0 // pred_fallthru
    _
  // Predicated region
  $region6: #{tpu_custom_call.1} parent=0 // pred_check
    _
  $region7: #{tpu_custom_call.1} parent=0 // pred_check_branch
    %11 = sbr.rel (0) target = $region9
  $region8: #{tpu_custom_call.1} parent=0 // pred_region
    _
  $region9: #{tpu_custom_call.1} parent=0 // pred_fallthru
    _
  // Predicated region
  $region10: #{tpu_custom_call.1} parent=0 // pred_check
    _
  $region11: #{tpu_custom_call.1} parent=0 // pred_check_branch
    %13 = sbr.rel (0) target = $region13
  $region12: #{tpu_custom_call.1} parent=0 // pred_region
    _
  $region13: #{tpu_custom_call.1} parent=0 // pred_fallthru
    _
  %v14 = vld [vmem:[%s0] sm:$0xff]
  %v15 = vmul.f32 %v14, %v14
  %vm16 = vcmask 261120
  %v17 = vsel %vm16, %v15, 0.0
  %18 = vadd.xlane.f32.xlu0 %v17
  %v19 = vpop.xlane.xlu0 %18
  %v20 = vld [vmem:[%s2] sm:$0x1]
  %v21 = vld [vmem:[%s1] sm:$0xff]
  %v22 = vld [vmem:[%s1 + $0x8] sm:$0xff]
  %v23 = vld [vmem:[%s1 + $0x10] sm:$0xff]
  %v24 = vld [vmem:[%s1 + $0x18] sm:$0xff]
  %v26 = vsel %vm16, %v14, 0
  %28 = vmatpush.msra.mxu0 0.0
  %29 = vmatpush.msra.mxu0 0.0
  %30 = vmatpush.msra.mxu0 0.0
  %31 = vmatpush.msra.mxu0 0.0
  %32 = vmatpush.msra.mxu0 0.0
  %33 = vmatpush.msra.mxu0 0.0
  %34 = vmatpush.msra.mxu0 0.0
  %35 = vmatpush.msra.mxu0 0.0
  %36 = vmatpush.msra.mxu0 0.0
  %37 = vmatpush.msra.mxu0 0.0
  %38 = vmatpush.msra.mxu0 0.0
  %39 = vmatpush.msra.mxu0 0.0
  %40 = vmatpush.msra.mxu0 %v24
  %41 = vmatpush.msra.mxu0 %v23
  %42 = vmatpush.msra.mxu0 %v22
  %43 = vmatpush.msra.mxu0 %v21
  %44 = vmatmul.f32.gmra.mxu0 %v26
  %v45 = vpop.f32.mrf.mxu0
  %v46 = vadd.f32 0.0, %v45
  %47 = vdwg.mxu0
  %v49 = vperm.slane %v20, 0
  %v51 = vadd.f32 %v19, %v49
  %v52 = vmul.f32 %v46, 2.0
  %v53 = vsub.f32 %v51, %v52
  %v54 = vmax.f32 %v53, 0.0
  %v55 = vadd.f32 %v54, 1.0
  %v56 = vrcp.pop %v55
  %v57 = vmul.f32 %v55, %v56
  %v58 = vsub.f32 2.0, %v57
  %v59 = vmul.f32 %v56, %v58
  %vm60 = vcmask 31744
  %v61 = vsel %vm60, %v59, 0.0
  %62 = vadd.xlane.f32.xlu0 %v61
  %v63 = vpop.xlane.xlu0 %62
  %v64 = vrcp.pop %v63
  %v65 = vmul.f32 %v63, %v64
  %v66 = vsub.f32 2.0, %v65
  %v67 = vmul.f32 %v64, %v66
  %v68 = vmul.f32 %v59, %v67
  %69 = vst.msk [vmem:[%s3] sm:$0xff] %vm60, %v68
  // Predicated region
  $region14: #{tpu_custom_call.1} parent=0 // pred_check
    _
  $region15: #{tpu_custom_call.1} parent=0 // pred_check_branch
    %71 = sbr.rel (0) target = $region17
  $region16: #{tpu_custom_call.1} parent=0 // pred_region
    _
  $region17: #{tpu_custom_call.1} parent=0 // pred_fallthru
    _
  // Predicated region
  $region18: #{tpu_custom_call.1} parent=0 // pred_check
    _
  $region19: #{tpu_custom_call.1} parent=0 // pred_check_branch
    %73 = sbr.rel (0) target = $region21
  $region20: #{tpu_custom_call.1} parent=0 // pred_region
    _
  $region21: #{tpu_custom_call.1} parent=0 // pred_fallthru
    _

// kernel: tpu_custom_call.1
$region0: #{tpu_custom_call.1}
  #allocation0 [shape = 'u32[]', space=smem, size = 0x4, offset = 0x4, fixed_abs, tag = 'smem constant byte address 0x4 - core index']
  #allocation1 [shape = 'u32[72,128]{1,0:T(1,128)}', space=vmem, size = 0x9000, scoped, tag = 'internal scratch']
  %s0 = inlined_call_operand.vmem [shape: f32[8,32], index: 0, kind: input, shape index: {}]
  %s1 = inlined_call_operand.vmem [shape: f32[32,4], index: 1, kind: input, shape index: {}]
  %s2 = inlined_call_operand.vmem [shape: f32[1,4], index: 2, kind: input, shape index: {}]
  %s3 = inlined_call_operand.vmem [shape: f32[8,4], index: 3, kind: output, shape index: {}]
  %s4 = sld [smem:[#allocation0]]
  $region22: #{tpu_custom_call.1} parent=0
    _
  %s6 = ssub.s32 1, %s4
  %s7 = scalar_select 0, %s6, %s4
  // Predicated region
  $region2: #{tpu_custom_call.1} parent=0 // pred_check
    _
  $region3: #{tpu_custom_call.1} parent=0 // pred_check_branch
    %9 = sbr.rel (0) target = $region5
  $region4: #{tpu_custom_call.1} parent=0 // pred_region
    _
  $region5: #{tpu_custom_call.1} parent=0 // pred_fallthru
    _
  // Predicated region
  $region6: #{tpu_custom_call.1} parent=0 // pred_check
    _
  $region7: #{tpu_custom_call.1} parent=0 // pred_check_branch
    %11 = sbr.rel (0) target = $region9
  $region8: #{tpu_custom_call.1} parent=0 // pred_region
    _
  $region9: #{tpu_custom_call.1} parent=0 // pred_fallthru
    _
  // Predicated region
  $region10: #{tpu_custom_call.1} parent=0 // pred_check
    _
  $region11: #{tpu_custom_call.1} parent=0 // pred_check_branch
    %13 = sbr.rel (0) target = $region13
  $region12: #{tpu_custom_call.1} parent=0 // pred_region
    _
  $region13: #{tpu_custom_call.1} parent=0 // pred_fallthru
    _
  %v14 = vld [vmem:[%s0] sm:$0xff]
  %v15 = vmul.f32 %v14, %v14
  %vm16 = vcmask 261120
  %v17 = vsel %vm16, %v15, 0.0
  %18 = vadd.xlane.f32.xlu0 %v17
  %v19 = vpop.xlane.xlu0 %18
  %v20 = vld [vmem:[%s2] sm:$0x1]
  %v21 = vld [vmem:[%s1] sm:$0xff]
  %v22 = vld [vmem:[%s1 + $0x8] sm:$0xff]
  %v23 = vld [vmem:[%s1 + $0x10] sm:$0xff]
  %v24 = vld [vmem:[%s1 + $0x18] sm:$0xff]
  %v26 = vsel %vm16, %v14, 0
  %28 = vmatpush.msra.mxu0 0.0
  %29 = vmatpush.msra.mxu0 0.0
  %30 = vmatpush.msra.mxu0 0.0
  %31 = vmatpush.msra.mxu0 0.0
  %32 = vmatpush.msra.mxu0 0.0
  %33 = vmatpush.msra.mxu0 0.0
  %34 = vmatpush.msra.mxu0 0.0
  %35 = vmatpush.msra.mxu0 0.0
  %36 = vmatpush.msra.mxu0 0.0
  %37 = vmatpush.msra.mxu0 0.0
  %38 = vmatpush.msra.mxu0 0.0
  %39 = vmatpush.msra.mxu0 0.0
  %40 = vmatpush.msra.mxu0 %v24
  %41 = vmatpush.msra.mxu0 %v23
  %42 = vmatpush.msra.mxu0 %v22
  %43 = vmatpush.msra.mxu0 %v21
  %44 = vmatmul.f32.gmra.mxu0 %v26
  %v45 = vpop.f32.mrf.mxu0
  %v46 = vadd.f32 0.0, %v45
  %47 = vdwg.mxu0
  %v49 = vperm.slane %v20, 0
  %v51 = vadd.f32 %v19, %v49
  %v52 = vmul.f32 %v46, 2.0
  %v53 = vsub.f32 %v51, %v52
  %v54 = vmax.f32 %v53, 0.0
  %v55 = vadd.f32 %v54, 1.0
  %v56 = vrcp.pop %v55
  %v57 = vmul.f32 %v55, %v56
  %v58 = vsub.f32 2.0, %v57
  %v59 = vmul.f32 %v56, %v58
  %vm60 = vcmask 31744
  %v61 = vsel %vm60, %v59, 0.0
  %62 = vadd.xlane.f32.xlu0 %v61
  %v63 = vpop.xlane.xlu0 %62
  %v64 = vrcp.pop %v63
  %v65 = vmul.f32 %v63, %v64
  %v66 = vsub.f32 2.0, %v65
  %v67 = vmul.f32 %v64, %v66
  %v68 = vmul.f32 %v59, %v67
  %69 = vst.msk [vmem:[%s3] sm:$0xff] %vm60, %v68
  // Predicated region
  $region14: #{tpu_custom_call.1} parent=0 // pred_check
    _
  $region15: #{tpu_custom_call.1} parent=0 // pred_check_branch
    %71 = sbr.rel (0) target = $region17
  $region16: #{tpu_custom_call.1} parent=0 // pred_region
    _
  $region17: #{tpu_custom_call.1} parent=0 // pred_fallthru
    _
  // Predicated region
  $region18: #{tpu_custom_call.1} parent=0 // pred_check
    _
  $region19: #{tpu_custom_call.1} parent=0 // pred_check_branch
    %73 = sbr.rel (0) target = $region21
  $region20: #{tpu_custom_call.1} parent=0 // pred_region
    _
  $region21: #{tpu_custom_call.1} parent=0 // pred_fallthru
    _

</llo_original>
